<compile_context>
chip_gen: v6e
topology: v6e:2x2x1
jax: 0.10.0
libtpu: 0.0.40
codegen_flags: <defaults>
</compile_context>

<pallas_src>
import jax
import jax.numpy as jnp
from jax.experimental import pallas as pl
from jax.experimental.pallas import tpu as pltpu


def _round_up(x, m):
    return (x + m - 1) // m * m


def _pick_batch_tile(B, in_pad):
    """Batch tile: >=128 rows when possible, <=8 grid steps, v5e-safe VMEM."""
    b8 = _round_up(B, 8)
    steps = max(1, min(8, b8 // 128))          # only split once tiles stay >=128 rows
    tb = _round_up(-(-b8 // steps), 8)
    tb = min(tb, 512)
    # Double-buffered bf16 x tile (2 bufs * TB * in_pad * 2 B) capped at ~6 MiB.
    cap = ((6 << 20) // (2 * 2 * in_pad)) // 8 * 8
    return max(8, min(tb, max(8, cap)))


def _mlp_kernel(b3_ref, x_ref, w1_ref, b1_ref, w2_ref, b2_ref, w3_ref, out_ref):
    """One batch tile of: Linear+ReLU -> Linear+ReLU -> Linear(out=1).

    Global normalization is pre-folded into (w1, b1) by the wrapper; Dropout
    is identity in eval mode.  b3_ref is an SMEM f32[1] scalar-prefetch arg.
    """
    # Layer 1: bf16 operands on the MXU, f32 accumulation.  Zero-padded K rows
    # of W1 / feature columns of x contribute nothing.
    h1 = jnp.dot(x_ref[...], w1_ref[...], preferred_element_type=jnp.float32)
    h1 = jnp.maximum(h1 + b1_ref[...], 0.0)                 # f32 VPU (v5e-safe)

    # Layer 2
    h2 = jnp.dot(h1.astype(jnp.bfloat16), w2_ref[...],
                 preferred_element_type=jnp.float32)
    h2 = jnp.maximum(h2 + b2_ref[...], 0.0)

    # Layer 3 (out_features == 1): VPU multiply + XLU reduce, not an N=1 matmul.
    w3 = w3_ref[...].astype(jnp.float32)                    # (1, hidden)
    logit = jnp.sum(h2 * w3, axis=-1, keepdims=True) + b3_ref[0]
    out_ref[...] = logit.astype(out_ref.dtype)


@jax.jit
def simple_binary_classifier_forward(x, params):
    """x: (B, in_dim) float32.  Returns logits (B, 1) float32 (eval mode)."""
    w1, b1, w2, b2, w3, b3 = params
    B, in_dim = x.shape
    hidden = w1.shape[1]
    assert hidden % 128 == 0, "hidden_dim must be a multiple of 128 (default 128)"

    # --- JAX glue: FFT preprocessing + GLOBAL normalization stats -----------
    x_fft = jnp.abs(jnp.fft.fft(x.astype(jnp.float32), axis=-1))

    n = x_fft.size
    mu = jnp.mean(x_fft)
    var = jnp.sum((x_fft - mu) ** 2) / (n - 1)              # torch.std: unbiased (ddof=1)
    inv_std = jax.lax.rsqrt(var)

    # Fold normalization into layer 1 (runtime, cheap):
    #   ((x - mu) * inv_std) @ W1 + b1 == x @ (inv_std*W1) + (b1 - mu*inv_std*sum_k W1)
    w1_eff = inv_std * w1                                   # f32, scaled before bf16 cast
    b1_eff = (b1 - mu * inv_std * jnp.sum(w1, axis=0, keepdims=True)).astype(jnp.float32)

    # --- layout prep: lane-dense feature dim, batch padded to the tile ------
    in_pad = _round_up(in_dim, 256)                         # 256-deep MXU on v6e/v7x
    TB = _pick_batch_tile(B, in_pad)
    B_pad = _round_up(B, TB)

    # Single fused staging op: cast to bf16 (half the HBM bytes) + pad.
    x_bf = x_fft.astype(jnp.bfloat16)
    if (B_pad, in_pad) != (B, in_dim):
        x_bf = jnp.pad(x_bf, ((0, B_pad - B), (0, in_pad - in_dim)))

    w1p = jnp.pad(w1_eff, ((0, in_pad - in_dim), (0, 0))).astype(jnp.bfloat16)
    w2b = w2.astype(jnp.bfloat16)
    b2f = b2.astype(jnp.float32)
    w3r = w3.reshape(1, hidden).astype(jnp.bfloat16)
    scalars = b3.reshape(1).astype(jnp.float32)             # -> SMEM via scalar prefetch

    # VMEM budget (assume 2 buffers everywhere for headroom) + explicit limit.
    vmem_need = (2 * TB * in_pad * 2 + 2 * TB * 4
                 + 2 * in_pad * hidden * 2 + 2 * hidden * hidden * 2
                 + 2 * 3 * hidden * 4)
    vmem_limit = max(16 << 20, min(48 << 20, int(vmem_need * 1.5) + (2 << 20)))

    flops = 2 * B_pad * (in_pad * hidden + hidden * hidden + hidden)
    bytes_accessed = (x_bf.size * 2 + w1p.size * 2 + w2b.size * 2 + w3r.size * 2
                      + b1_eff.size * 4 + b2f.size * 4 + B_pad * 4 + 4)

    grid_spec = pltpu.PrefetchScalarGridSpec(
        num_scalar_prefetch=1,                              # b3 -> SMEM
        grid=(B_pad // TB,),
        in_specs=[
            pl.BlockSpec((TB, in_pad), lambda i, s: (i, 0)),      # x streams per tile
            pl.BlockSpec((in_pad, hidden), lambda i, s: (0, 0)),  # W1 resident
            pl.BlockSpec((1, hidden), lambda i, s: (0, 0)),       # b1 resident
            pl.BlockSpec((hidden, hidden), lambda i, s: (0, 0)),  # W2 resident
            pl.BlockSpec((1, hidden), lambda i, s: (0, 0)),       # b2 resident
            pl.BlockSpec((1, hidden), lambda i, s: (0, 0)),       # w3 row resident
        ],
        out_specs=pl.BlockSpec((TB, 1), lambda i, s: (i, 0)),
    )

    out = pl.pallas_call(
        _mlp_kernel,
        out_shape=jax.ShapeDtypeStruct((B_pad, 1), jnp.float32),
        grid_spec=grid_spec,
        compiler_params=pltpu.CompilerParams(
            dimension_semantics=("parallel",),
            vmem_limit_bytes=vmem_limit),
        cost_estimate=pl.CostEstimate(
            flops=flops, transcendentals=0, bytes_accessed=bytes_accessed),
    )(scalars, x_bf, w1p, b1_eff, w2b, b2f, w3r)

    return out[:B]


def init_params(key, in_dim, hidden_dim=128):
    """Deterministic synthetic parameters (PyTorch-like uniform fan-in init)."""
    k1, k2, k3, k4, k5, k6 = jax.random.split(key, 6)

    def lin(kw, kb, fan_in, fan_out):
        bound = 1.0 / jnp.sqrt(fan_in)
        w = jax.random.uniform(kw, (fan_in, fan_out), jnp.float32, -bound, bound)
        b = jax.random.uniform(kb, (1, fan_out), jnp.float32, -bound, bound)
        return w, b

    w1, b1 = lin(k1, k2, in_dim, hidden_dim)
    w2, b2 = lin(k3, k4, hidden_dim, hidden_dim)
    w3, b3 = lin(k5, k6, hidden_dim, 1)
    return (w1, b1, w2, b2, w3, b3)


if __name__ == "__main__":
    B, IN_DIM, HIDDEN = 4, 64, 128
    key = jax.random.PRNGKey(0)
    kx, kp = jax.random.split(key)

    x = jax.random.normal(kx, (B, IN_DIM), dtype=jnp.float32)
    params = init_params(kp, IN_DIM, HIDDEN)

    logits = simple_binary_classifier_forward(x, params)
    jax.block_until_ready(logits)

    assert logits.shape == (B, 1) and logits.dtype == jnp.float32
    assert bool(jnp.all(jnp.isfinite(logits)))
    print("KERNEL_OK")
</pallas_src>

<mosaic_0001>
module attributes {stable_mosaic.version = 11 : i64} {
  func.func @_mlp_kernel(%arg0: i32, %arg1: memref<1xf32, #tpu.memory_space<smem>>, %arg2: memref<8x256xbf16, #tpu.memory_space<vmem>>, %arg3: memref<256x128xbf16, #tpu.memory_space<vmem>>, %arg4: memref<1x128xf32, #tpu.memory_space<vmem>>, %arg5: memref<128x128xbf16, #tpu.memory_space<vmem>>, %arg6: memref<1x128xf32, #tpu.memory_space<vmem>>, %arg7: memref<1x128xbf16, #tpu.memory_space<vmem>>, %arg8: memref<8x1xf32, #tpu.memory_space<vmem>>) attributes {dimension_semantics = [#tpu.dimension_semantics<parallel>], iteration_bounds = array<i64: 1>, scalar_prefetch = 1 : i64, scratch_operands = 0 : i64, tpu.core_type = #tpu.core_type<tc>, window_params = [{transform_indices = @transform_0, window_bounds = array<i64: 8, 256>}, {pipeline_mode = #tpu.pipeline_mode<synchronous>, transform_indices = @transform_1, window_bounds = array<i64: 256, 128>}, {pipeline_mode = #tpu.pipeline_mode<synchronous>, transform_indices = @transform_2, window_bounds = array<i64: 1, 128>}, {pipeline_mode = #tpu.pipeline_mode<synchronous>, transform_indices = @transform_3, window_bounds = array<i64: 128, 128>}, {pipeline_mode = #tpu.pipeline_mode<synchronous>, transform_indices = @transform_4, window_bounds = array<i64: 1, 128>}, {pipeline_mode = #tpu.pipeline_mode<synchronous>, transform_indices = @transform_5, window_bounds = array<i64: 1, 128>}, {transform_indices = @transform_6, window_bounds = array<i64: 8, 1>}]} {
    %c0 = arith.constant 0 : index
    %c0_0 = arith.constant 0 : index
    %0 = vector.load %arg2[%c0, %c0_0] : memref<8x256xbf16, #tpu.memory_space<vmem>>, vector<8x256xbf16>
    %c0_1 = arith.constant 0 : index
    %c0_2 = arith.constant 0 : index
    %1 = vector.load %arg3[%c0_1, %c0_2] : memref<256x128xbf16, #tpu.memory_space<vmem>>, vector<256x128xbf16>
    %cst = arith.constant dense<0.000000e+00> : vector<8x128xf32>
    %2 = tpu.matmul %0, %1, %cst {dimension_numbers = #tpu.dot_dimension_numbers<[1], [0], [0], [1], [0, 0, 1, 1], [], []>} : vector<8x256xbf16>, vector<256x128xbf16>, vector<8x128xf32> -> vector<8x128xf32>
    %c0_3 = arith.constant 0 : index
    %c0_4 = arith.constant 0 : index
    %3 = vector.load %arg4[%c0_3, %c0_4] : memref<1x128xf32, #tpu.memory_space<vmem>>, vector<1x128xf32>
    %4 = vector.broadcast %3 : vector<1x128xf32> to vector<8x128xf32>
    %5 = arith.addf %2, %4 : vector<8x128xf32>
    %cst_5 = arith.constant 0.000000e+00 : f32
    %6 = vector.broadcast %cst_5 : f32 to vector<8x128xf32>
    %7 = arith.maximumf %5, %6 : vector<8x128xf32>
    %8 = arith.truncf %7 : vector<8x128xf32> to vector<8x128xbf16>
    %c0_6 = arith.constant 0 : index
    %c0_7 = arith.constant 0 : index
    %9 = vector.load %arg5[%c0_6, %c0_7] : memref<128x128xbf16, #tpu.memory_space<vmem>>, vector<128x128xbf16>
    %cst_8 = arith.constant dense<0.000000e+00> : vector<8x128xf32>
    %10 = tpu.matmul %8, %9, %cst_8 {dimension_numbers = #tpu.dot_dimension_numbers<[1], [0], [0], [1], [0, 0, 1, 1], [], []>} : vector<8x128xbf16>, vector<128x128xbf16>, vector<8x128xf32> -> vector<8x128xf32>
    %c0_9 = arith.constant 0 : index
    %c0_10 = arith.constant 0 : index
    %11 = vector.load %arg6[%c0_9, %c0_10] : memref<1x128xf32, #tpu.memory_space<vmem>>, vector<1x128xf32>
    %12 = vector.broadcast %11 : vector<1x128xf32> to vector<8x128xf32>
    %13 = arith.addf %10, %12 : vector<8x128xf32>
    %cst_11 = arith.constant 0.000000e+00 : f32
    %14 = vector.broadcast %cst_11 : f32 to vector<8x128xf32>
    %15 = arith.maximumf %13, %14 : vector<8x128xf32>
    %c0_12 = arith.constant 0 : index
    %c0_13 = arith.constant 0 : index
    %16 = vector.load %arg7[%c0_12, %c0_13] : memref<1x128xbf16, #tpu.memory_space<vmem>>, vector<1x128xbf16>
    %17 = arith.extf %16 : vector<1x128xbf16> to vector<1x128xf32>
    %18 = vector.broadcast %17 : vector<1x128xf32> to vector<8x128xf32>
    %19 = arith.mulf %15, %18 : vector<8x128xf32>
    %cst_14 = arith.constant dense<0.000000e+00> : vector<8xf32>
    %20 = vector.multi_reduction <add>, %19, %cst_14 [1] : vector<8x128xf32> to vector<8xf32>
    %21 = vector.shape_cast %20 : vector<8xf32> to vector<8x1xf32>
    %c0_15 = arith.constant 0 : index
    %22 = memref.load %arg1[%c0_15] : memref<1xf32, #tpu.memory_space<smem>>
    %23 = vector.broadcast %22 : f32 to vector<8x1xf32>
    %24 = arith.addf %21, %23 : vector<8x1xf32>
    %c0_16 = arith.constant 0 : index
    %c0_17 = arith.constant 0 : index
    %25 = vector.load %arg8[%c0_16, %c0_17] : memref<8x1xf32, #tpu.memory_space<vmem>>, vector<8x1xf32>
    tpu.vector_store %arg8[%c0_16, %c0_17], %24 {strides = array<i32>} : memref<8x1xf32, #tpu.memory_space<vmem>>, vector<8x1xf32>,
    return
  }
  func.func @transform_0(%arg0: i32, %arg1: memref<1xf32, #tpu.memory_space<smem>>) -> (i32, i32) {
    %c0_i32 = arith.constant 0 : i32
    %c0_i32_0 = arith.constant 0 : i32
    return %arg0, %c0_i32 : i32, i32
  }
  func.func @transform_1(%arg0: i32, %arg1: memref<1xf32, #tpu.memory_space<smem>>) -> (i32, i32) {
    %c0_i32 = arith.constant 0 : i32
    %c0_i32_0 = arith.constant 0 : i32
    %c0_i32_1 = arith.constant 0 : i32
    return %c0_i32, %c0_i32_0 : i32, i32
  }
  func.func @transform_2(%arg0: i32, %arg1: memref<1xf32, #tpu.memory_space<smem>>) -> (i32, i32) {
    %c0_i32 = arith.constant 0 : i32
    %c0_i32_0 = arith.constant 0 : i32
    %c0_i32_1 = arith.constant 0 : i32
    return %c0_i32, %c0_i32_0 : i32, i32
  }
  func.func @transform_3(%arg0: i32, %arg1: memref<1xf32, #tpu.memory_space<smem>>) -> (i32, i32) {
    %c0_i32 = arith.constant 0 : i32
    %c0_i32_0 = arith.constant 0 : i32
    %c0_i32_1 = arith.constant 0 : i32
    return %c0_i32, %c0_i32_0 : i32, i32
  }
  func.func @transform_4(%arg0: i32, %arg1: memref<1xf32, #tpu.memory_space<smem>>) -> (i32, i32) {
    %c0_i32 = arith.constant 0 : i32
    %c0_i32_0 = arith.constant 0 : i32
    %c0_i32_1 = arith.constant 0 : i32
    return %c0_i32, %c0_i32_0 : i32, i32
  }
  func.func @transform_5(%arg0: i32, %arg1: memref<1xf32, #tpu.memory_space<smem>>) -> (i32, i32) {
    %c0_i32 = arith.constant 0 : i32
    %c0_i32_0 = arith.constant 0 : i32
    %c0_i32_1 = arith.constant 0 : i32
    return %c0_i32, %c0_i32_0 : i32, i32
  }
  func.func @transform_6(%arg0: i32, %arg1: memref<1xf32, #tpu.memory_space<smem>>) -> (i32, i32) {
    %c0_i32 = arith.constant 0 : i32
    %c0_i32_0 = arith.constant 0 : i32
    return %arg0, %c0_i32 : i32, i32
  }
}

</mosaic_0001>

<llo_original>
// kernel: simple_binary_classifier_forward.1
$region0: #{simple_binary_classifier_forward.1}
  #allocation0 [shape = 'u32[]', space=smem, size = 0x4, offset = 0x4, fixed_abs, tag = 'smem constant byte address 0x4 - core index']
  #allocation1 [shape = 'u32[144,128]{1,0:T(1,128)}', space=vmem, size = 0x12000, scoped, tag = 'internal scratch']
  #allocation2 [shape = 's32[1]{0}', space=sflag, size = 0x4, scoped, tag = 'scoped memory for simple_binary_classifier_forward.1']
  #allocation3 [shape = 'f32[1]{0:T(128)S(6)}', space=smem, size = 0x200, scoped, tag = 'prefetched SMEM operand 0']
  %s0 = inlined_call_operand.<no memory space> [shape: f32[1], index: 0, kind: input, shape index: {}]
  %s1 = inlined_call_operand.vmem [shape: bf16[8,256], index: 1, kind: input, shape index: {}]
  %s2 = inlined_call_operand.vmem [shape: bf16[256,128], index: 2, kind: input, shape index: {}]
  %s3 = inlined_call_operand.vmem [shape: f32[1,128], index: 3, kind: input, shape index: {}]
  %s4 = inlined_call_operand.vmem [shape: bf16[128,128], index: 4, kind: input, shape index: {}]
  %s5 = inlined_call_operand.vmem [shape: f32[1,128], index: 5, kind: input, shape index: {}]
  %s6 = inlined_call_operand.vmem [shape: bf16[1,128], index: 6, kind: input, shape index: {}]
  %s7 = inlined_call_operand.vmem [shape: f32[8,1], index: 7, kind: output, shape index: {}]
  %s8 = sld [smem:[#allocation0]]
  $region34: #{simple_binary_classifier_forward.1} parent=0
    _
  %s10 = ssub.s32 1, %s8
  %s11 = scalar_select 0, %s10, %s8
  %12 = sst [smem:[#allocation3]] %s0
  // Predicated region
  $region2: #{simple_binary_classifier_forward.1} parent=0 // pred_check
    _
  $region3: #{simple_binary_classifier_forward.1} parent=0 // pred_check_branch
    %14 = sbr.rel (0) target = $region5
  $region4: #{simple_binary_classifier_forward.1} parent=0 // pred_region
    _
  $region5: #{simple_binary_classifier_forward.1} parent=0 // pred_fallthru
    _
  // Predicated region
  $region6: #{simple_binary_classifier_forward.1} parent=0 // pred_check
    _
  $region7: #{simple_binary_classifier_forward.1} parent=0 // pred_check_branch
    %16 = sbr.rel (0) target = $region9
  $region8: #{simple_binary_classifier_forward.1} parent=0 // pred_region
    _
  $region9: #{simple_binary_classifier_forward.1} parent=0 // pred_fallthru
    _
  // Predicated region
  $region10: #{simple_binary_classifier_forward.1} parent=0 // pred_check
    _
  $region11: #{simple_binary_classifier_forward.1} parent=0 // pred_check_branch
    %18 = sbr.rel (0) target = $region13
  $region12: #{simple_binary_classifier_forward.1} parent=0 // pred_region
    _
  $region13: #{simple_binary_classifier_forward.1} parent=0 // pred_fallthru
    _
  // Predicated region
  $region14: #{simple_binary_classifier_forward.1} parent=0 // pred_check
    _
  $region15: #{simple_binary_classifier_forward.1} parent=0 // pred_check_branch
    %20 = sbr.rel (0) target = $region17
  $region16: #{simple_binary_classifier_forward.1} parent=0 // pred_region
    _
  $region17: #{simple_binary_classifier_forward.1} parent=0 // pred_fallthru
    _
  // Predicated region
  $region18: #{simple_binary_classifier_forward.1} parent=0 // pred_check
    _
  $region19: #{simple_binary_classifier_forward.1} parent=0 // pred_check_branch
    %22 = sbr.rel (0) target = $region21
  $region20: #{simple_binary_classifier_forward.1} parent=0 // pred_region
    _
  $region21: #{simple_binary_classifier_forward.1} parent=0 // pred_fallthru
    _
  // Predicated region
  $region22: #{simple_binary_classifier_forward.1} parent=0 // pred_check
    _
  $region23: #{simple_binary_classifier_forward.1} parent=0 // pred_check_branch
    %24 = sbr.rel (0) target = $region25
  $region24: #{simple_binary_classifier_forward.1} parent=0 // pred_region
    _
  $region25: #{simple_binary_classifier_forward.1} parent=0 // pred_fallthru
    _
  %v26 = vld [vmem:[%s1] sm:$0xff]
  %v27 = vld [vmem:[%s2] sm:$0xf]
  %v28 = vld [vmem:[%s2 + $0x4] sm:$0xf]
  %v29 = vld [vmem:[%s2 + $0x8] sm:$0xf]
  %v30 = vld [vmem:[%s2 + $0xc] sm:$0xf]
  %v31 = vld [vmem:[%s2 + $0x10] sm:$0xf]
  %v32 = vld [vmem:[%s2 + $0x14] sm:$0xf]
  %v33 = vld [vmem:[%s2 + $0x18] sm:$0xf]
  %v34 = vld [vmem:[%s2 + $0x1c] sm:$0xf]
  %v35 = vld [vmem:[%s2 + $0x20] sm:$0xf]
  %v36 = vld [vmem:[%s2 + $0x24] sm:$0xf]
  %v37 = vld [vmem:[%s2 + $0x28] sm:$0xf]
  %v38 = vld [vmem:[%s2 + $0x2c] sm:$0xf]
  %v39 = vld [vmem:[%s2 + $0x30] sm:$0xf]
  %v40 = vld [vmem:[%s2 + $0x34] sm:$0xf]
  %v41 = vld [vmem:[%s2 + $0x38] sm:$0xf]
  %v42 = vld [vmem:[%s2 + $0x3c] sm:$0xf]
  %v43 = vld [vmem:[%s2 + $0x40] sm:$0xf]
  %v44 = vld [vmem:[%s2 + $0x44] sm:$0xf]
  %v45 = vld [vmem:[%s2 + $0x48] sm:$0xf]
  %v46 = vld [vmem:[%s2 + $0x4c] sm:$0xf]
  %v47 = vld [vmem:[%s2 + $0x50] sm:$0xf]
  %v48 = vld [vmem:[%s2 + $0x54] sm:$0xf]
  %v49 = vld [vmem:[%s2 + $0x58] sm:$0xf]
  %v50 = vld [vmem:[%s2 + $0x5c] sm:$0xf]
  %v51 = vld [vmem:[%s2 + $0x60] sm:$0xf]
  %v52 = vld [vmem:[%s2 + $0x64] sm:$0xf]
  %v53 = vld [vmem:[%s2 + $0x68] sm:$0xf]
  %v54 = vld [vmem:[%s2 + $0x6c] sm:$0xf]
  %v55 = vld [vmem:[%s2 + $0x70] sm:$0xf]
  %v56 = vld [vmem:[%s2 + $0x74] sm:$0xf]
  %v57 = vld [vmem:[%s2 + $0x78] sm:$0xf]
  %v58 = vld [vmem:[%s2 + $0x7c] sm:$0xf]
  %v59 = vld [vmem:[%s3] sm:$0x1]
  %v61 = vlaneseq
  %v62 = vshrl.u32 %v61, 7
  %v63 = vsub.s32 0, %v62
  %v64 = vrot.slane %v59, %v63
  %v67 = vunpack.c.l.b16 %v26
  %v68 = vunpack.c.h.b16 %v26
  %v69 = vpack.c.b16 %v67, %v67
  %v70 = vpack.c.b16 %v68, %v68
  %v105 = vunpack.c.l.b16 %v27
  %v106 = vunpack.c.l.b16 %v28
  %v107 = vunpack.c.l.b16 %v29
  %v108 = vunpack.c.l.b16 %v30
  %v109 = vunpack.c.l.b16 %v31
  %v110 = vunpack.c.l.b16 %v32
  %v111 = vunpack.c.l.b16 %v33
  %v112 = vunpack.c.l.b16 %v34
  %v113 = vunpack.c.l.b16 %v35
  %v114 = vunpack.c.l.b16 %v36
  %v115 = vunpack.c.l.b16 %v37
  %v116 = vunpack.c.l.b16 %v38
  %v117 = vunpack.c.l.b16 %v39
  %v118 = vunpack.c.l.b16 %v40
  %v119 = vunpack.c.l.b16 %v41
  %v120 = vunpack.c.l.b16 %v42
  %v121 = vunpack.c.l.b16 %v43
  %v122 = vunpack.c.l.b16 %v44
  %v123 = vunpack.c.l.b16 %v45
  %v124 = vunpack.c.l.b16 %v46
  %v125 = vunpack.c.l.b16 %v47
  %v126 = vunpack.c.l.b16 %v48
  %v127 = vunpack.c.l.b16 %v49
  %v128 = vunpack.c.l.b16 %v50
  %v129 = vunpack.c.l.b16 %v51
  %v130 = vunpack.c.l.b16 %v52
  %v131 = vunpack.c.l.b16 %v53
  %v132 = vunpack.c.l.b16 %v54
  %v133 = vunpack.c.l.b16 %v55
  %v134 = vunpack.c.l.b16 %v56
  %v135 = vunpack.c.l.b16 %v57
  %v136 = vunpack.c.l.b16 %v58
  %v137 = vpack.c.b16 %v106, %v105
  %v138 = vpack.c.b16 %v108, %v107
  %v139 = vpack.c.b16 %v110, %v109
  %v140 = vpack.c.b16 %v112, %v111
  %v141 = vpack.c.b16 %v114, %v113
  %v142 = vpack.c.b16 %v116, %v115
  %v143 = vpack.c.b16 %v118, %v117
  %v144 = vpack.c.b16 %v120, %v119
  %v145 = vpack.c.b16 %v122, %v121
  %v146 = vpack.c.b16 %v124, %v123
  %v147 = vpack.c.b16 %v126, %v125
  %v148 = vpack.c.b16 %v128, %v127
  %v149 = vpack.c.b16 %v130, %v129
  %v150 = vpack.c.b16 %v132, %v131
  %v151 = vpack.c.b16 %v134, %v133
  %v152 = vpack.c.b16 %v136, %v135
  %169 = vmatprep.subr.bf16.mxu0 0
  %170 = vmatpush1.bf16.msra.mxu0 %v144
  %171 = vmatprep.subr.bf16.mxu0 0
  %172 = vmatpush1.bf16.msra.mxu0 %v143
  %173 = vmatprep.subr.bf16.mxu0 0
  %174 = vmatpush1.bf16.msra.mxu0 %v142
  %175 = vmatprep.subr.bf16.mxu0 0
  %176 = vmatpush1.bf16.msra.mxu0 %v141
  %177 = vmatprep.subr.bf16.mxu0 0
  %178 = vmatpush1.bf16.msra.mxu0 %v140
  %179 = vmatprep.subr.bf16.mxu0 0
  %180 = vmatpush1.bf16.msra.mxu0 %v139
  %181 = vmatprep.subr.bf16.mxu0 0
  %182 = vmatpush1.bf16.msra.mxu0 %v138
  %183 = vmatprep.subr.bf16.mxu0 0
  %184 = vmatpush1.bf16.msra.mxu0 %v137
  %185 = vmatprep.subr.bf16.mxu0 0
  %186 = vmatpush2.bf16.msra.mxu0 %v152
  %187 = vmatprep.subr.bf16.mxu0 0
  %188 = vmatpush2.bf16.msra.mxu0 %v151
  %189 = vmatprep.subr.bf16.mxu0 0
  %190 = vmatpush2.bf16.msra.mxu0 %v150
  %191 = vmatprep.subr.bf16.mxu0 0
  %192 = vmatpush2.bf16.msra.mxu0 %v149
  %193 = vmatprep.subr.bf16.mxu0 0
  %194 = vmatpush2.bf16.msra.mxu0 %v148
  %195 = vmatprep.subr.bf16.mxu0 0
  %196 = vmatpush2.bf16.msra.mxu0 %v147
  %197 = vmatprep.subr.bf16.mxu0 0
  %198 = vmatpush2.bf16.msra.mxu0 %v146
  %199 = vmatprep.subr.bf16.mxu0 0
  %200 = vmatpush2.bf16.msra.mxu0 %v145
  %201 = vmatprep.mubr.bf16.mxu0 %v70
  %202 = vmatmul.mubr.bf16.gmra.mxu0 %v69
  %v203 = vpop.f32.mrf.mxu0
  %v204 = vadd.f32 %v64, %v203
  %v205 = vpop.f32.mrf.mxu0
  %v206 = vpop.f32.mrf.mxu0
  %v207 = vpop.f32.mrf.mxu0
  %208 = vdwg.mxu0
  %v209 = vmax.f32 %v204, 0.0
  %v210 = vpack.c.bf16 %v209, %v209
  %v211 = vld [vmem:[%s4] sm:$0xf]
  %v212 = vld [vmem:[%s4 + $0x4] sm:$0xf]
  %v213 = vld [vmem:[%s4 + $0x8] sm:$0xf]
  %v214 = vld [vmem:[%s4 + $0xc] sm:$0xf]
  %v215 = vld [vmem:[%s4 + $0x10] sm:$0xf]
  %v216 = vld [vmem:[%s4 + $0x14] sm:$0xf]
  %v217 = vld [vmem:[%s4 + $0x18] sm:$0xf]
  %v218 = vld [vmem:[%s4 + $0x1c] sm:$0xf]
  %v219 = vld [vmem:[%s4 + $0x20] sm:$0xf]
  %v220 = vld [vmem:[%s4 + $0x24] sm:$0xf]
  %v221 = vld [vmem:[%s4 + $0x28] sm:$0xf]
  %v222 = vld [vmem:[%s4 + $0x2c] sm:$0xf]
  %v223 = vld [vmem:[%s4 + $0x30] sm:$0xf]
  %v224 = vld [vmem:[%s4 + $0x34] sm:$0xf]
  %v225 = vld [vmem:[%s4 + $0x38] sm:$0xf]
  %v226 = vld [vmem:[%s4 + $0x3c] sm:$0xf]
  %v227 = vld [vmem:[%s5] sm:$0x1]
  %v229 = vlaneseq
  %v230 = vshrl.u32 %v229, 7
  %v231 = vsub.s32 0, %v230
  %v232 = vrot.slane %v227, %v231
  %v250 = vunpack.c.l.b16 %v211
  %v251 = vunpack.c.l.b16 %v212
  %v252 = vunpack.c.l.b16 %v213
  %v253 = vunpack.c.l.b16 %v214
  %v254 = vunpack.c.l.b16 %v215
  %v255 = vunpack.c.l.b16 %v216
  %v256 = vunpack.c.l.b16 %v217
  %v257 = vunpack.c.l.b16 %v218
  %v258 = vunpack.c.l.b16 %v219
  %v259 = vunpack.c.l.b16 %v220
  %v260 = vunpack.c.l.b16 %v221
  %v261 = vunpack.c.l.b16 %v222
  %v262 = vunpack.c.l.b16 %v223
  %v263 = vunpack.c.l.b16 %v224
  %v264 = vunpack.c.l.b16 %v225
  %v265 = vunpack.c.l.b16 %v226
  %v266 = vpack.c.b16 %v251, %v250
  %v267 = vpack.c.b16 %v253, %v252
  %v268 = vpack.c.b16 %v255, %v254
  %v269 = vpack.c.b16 %v257, %v256
  %v270 = vpack.c.b16 %v259, %v258
  %v271 = vpack.c.b16 %v261, %v260
  %v272 = vpack.c.b16 %v263, %v262
  %v273 = vpack.c.b16 %v265, %v264
  %282 = vmatprep.subr.bf16.mxu0 0
  %283 = vmatpush1.bf16.msra.mxu0 %v273
  %284 = vmatprep.subr.bf16.mxu0 0
  %285 = vmatpush1.bf16.msra.mxu0 %v272
  %286 = vmatprep.subr.bf16.mxu0 0
  %287 = vmatpush1.bf16.msra.mxu0 %v271
  %288 = vmatprep.subr.bf16.mxu0 0
  %289 = vmatpush1.bf16.msra.mxu0 %v270
  %290 = vmatprep.subr.bf16.mxu0 0
  %291 = vmatpush1.bf16.msra.mxu0 %v269
  %292 = vmatprep.subr.bf16.mxu0 0
  %293 = vmatpush1.bf16.msra.mxu0 %v268
  %294 = vmatprep.subr.bf16.mxu0 0
  %295 = vmatpush1.bf16.msra.mxu0 %v267
  %296 = vmatprep.subr.bf16.mxu0 0
  %297 = vmatpush1.bf16.msra.mxu0 %v266
  %298 = vmatprep.subr.bf16.mxu0 0
  %299 = vmatpush2.bf16.msra.mxu0 0
  %300 = vmatprep.subr.bf16.mxu0 0
  %301 = vmatpush2.bf16.msra.mxu0 0
  %302 = vmatprep.subr.bf16.mxu0 0
  %303 = vmatpush2.bf16.msra.mxu0 0
  %304 = vmatprep.subr.bf16.mxu0 0
  %305 = vmatpush2.bf16.msra.mxu0 0
  %306 = vmatprep.subr.bf16.mxu0 0
  %307 = vmatpush2.bf16.msra.mxu0 0
  %308 = vmatprep.subr.bf16.mxu0 0
  %309 = vmatpush2.bf16.msra.mxu0 0
  %310 = vmatprep.subr.bf16.mxu0 0
  %311 = vmatpush2.bf16.msra.mxu0 0
  %312 = vmatprep.subr.bf16.mxu0 0
  %313 = vmatpush2.bf16.msra.mxu0 0
  %314 = vmatprep.mubr.bf16.mxu0 0
  %315 = vmatmul.mubr.bf16.gmra.mxu0 %v210
  %v316 = vpop.f32.mrf.mxu0
  %v317 = vadd.f32 %v232, %v316
  %v318 = vpop.f32.mrf.mxu0
  %v319 = vpop.f32.mrf.mxu0
  %v320 = vpop.f32.mrf.mxu0
  %321 = vdwg.mxu0
  %v322 = vmax.f32 %v317, 0.0
  %v323 = vld [vmem:[%s6] sm:$0x1]
  %v324 = vunpack.c.l.bf16 %v323
  %v325 = vlaneseq
  %v326 = vshrl.u32 %v325, 7
  %v327 = vsub.s32 0, %v326
  %v328 = vrot.slane %v324, %v327
  %v329 = vmul.f32 %v322, %v328
  %330 = vadd.xlane.f32.xlu0 %v329
  %v331 = vpop.xlane.xlu0 %330
  %s332 = sld [smem:[#allocation3]]
  %v333 = vstv %s332
  %v334 = vadd.f32 %v331, %v333
  %vm335 = vcmask 7168
  %336 = vst.msk [vmem:[%s7] sm:$0xff] %vm335, %v334
  // Predicated region
  $region26: #{simple_binary_classifier_forward.1} parent=0 // pred_check
    _
  $region27: #{simple_binary_classifier_forward.1} parent=0 // pred_check_branch
    %338 = sbr.rel (0) target = $region29
  $region28: #{simple_binary_classifier_forward.1} parent=0 // pred_region
    _
  $region29: #{simple_binary_classifier_forward.1} parent=0 // pred_fallthru
    _
  // Predicated region
  $region30: #{simple_binary_classifier_forward.1} parent=0 // pred_check
    _
  $region31: #{simple_binary_classifier_forward.1} parent=0 // pred_check_branch
    %340 = sbr.rel (0) target = $region33
  $region32: #{simple_binary_classifier_forward.1} parent=0 // pred_region
    _
  $region33: #{simple_binary_classifier_forward.1} parent=0 // pred_fallthru
    _

</llo_original>
